<compile_context>
chip_gen: v5e
topology: v5e:2x2
jax: 0.10.0
libtpu: 0.0.40
codegen_flags: <defaults>
</compile_context>

<pallas_src>
import jax
import jax.numpy as jnp
from jax.experimental import pallas as pl
from jax.experimental.pallas import tpu as pltpu

BN_EPS = 1e-5
LANE = 128


def _round_up(a, b):
    return (a + b - 1) // b * b


def _fr_stats_kernel(x_ref, w_ref, stats_ref):
    # ReLU commutes with the strided pixel selection done in the wrapper.
    x = jnp.maximum(x_ref[...], 0)
    # One fused MXU matmul (block-diagonal weight => y == concat([y1, y2], -1)).
    y = jnp.dot(x, w_ref[...], preferred_element_type=jnp.float32)
    # Per-tile partial BatchNorm statistics; rows 2..7 intentionally unwritten.
    stats_ref[0:1, :] = jnp.sum(y, axis=0, keepdims=True)
    stats_ref[1:2, :] = jnp.sum(y * y, axis=0, keepdims=True)


def _fr_fused_kernel(x_ref, w_ref, ss_ref, o_ref):
    x = jnp.maximum(x_ref[...], 0)
    y = jnp.dot(x, w_ref[...], preferred_element_type=jnp.float32)
    # BatchNorm folded into a per-channel scale/shift; single lane-dense store.
    o_ref[...] = (y * ss_ref[0:1, :] + ss_ref[1:2, :]).astype(o_ref.dtype)


def factorized_reduce(x, w1, w2, gamma, beta, *, tile_m=None):
    """x: (N, C_in, H, W) f32 with H, W even.
    w1, w2: (C_out//2, C_in) 1x1-conv weights.  gamma, beta: (C_out,) BN affine.
    Returns (N, C_out, H//2, W//2) f32 (NCHW, matching PyTorch)."""
    N, C_in, H, W = x.shape
    assert H % 2 == 0 and W % 2 == 0
    C_half = w1.shape[0]
    assert w2.shape == (C_half, C_in)
    C_out = 2 * C_half
    Ho, Wo = H // 2, W // 2
    M = N * Ho * Wo
    K = 2 * C_in

    C_out_p = _round_up(C_out, LANE)    # lane-dense output stores
    k_vmem = _round_up(K, LANE)         # VMEM lane padding of the x12 tile

    # ---- Generation-aware budgets (v5e/v6e: 128 MiB VMEM, v7x: 64 MiB). ----
    try:
        vmem_cap = int(pltpu.get_tpu_info().vmem_capacity_bytes)
    except Exception:
        vmem_cap = 64 * 1024 * 1024     # conservative (v7x-safe) fallback
    big_vmem = vmem_cap >= 100 * 1024 * 1024
    stage_budget = (24 if big_vmem else 8) * 1024 * 1024
    tile_cap = 2048 if big_vmem else 1024
    limit_cap = (96 if big_vmem else 48) * 1024 * 1024

    # Per-row double-buffered pipeline cost.  Pass 2 dominates (bf16 x12 in,
    # f32 out, plus in-VMEM f32 y temporaries).
    row_p1 = 2 * (2 * k_vmem) + 2 * (4 * C_out_p)
    row_p2 = 2 * (2 * k_vmem + 4 * C_out_p) + 2 * (4 * C_out_p)
    row_bytes = max(row_p1, row_p2)

    if tile_m is None:
        t = max(16, (stage_budget // row_bytes) // 16 * 16)
        TILE_M = max(16, min(tile_cap, t, _round_up(M, 16)))
        # >= 2 row tiles whenever M allows, so the "parallel" grid axis can
        # feed both v7x TensorCores (extra grid step elsewhere is ~0.35 us).
        TILE_M = min(TILE_M, max(16, _round_up(pl.cdiv(M, 2), 16)))
    else:
        assert tile_m % 16 == 0
        TILE_M = tile_m
    num_tiles = pl.cdiv(M, TILE_M)
    M_pad = num_tiles * TILE_M

    # ---- Wrapper glue: strided pixel selection + channels-last flatten. ----
    # TODO(synk): fold this strided gather / layout change into the kernel DMA
    # (manual make_async_copy with strided .at[] slices on an ANY-space x) so
    # the bf16 x12 staging array is never materialized in HBM.
    x12 = jnp.concatenate([x[:, :, 0::2, 0::2], x[:, :, 1::2, 1::2]], axis=1)
    x12 = jnp.transpose(x12, (0, 2, 3, 1)).reshape(M, K)
    x12 = jnp.pad(x12, ((0, M_pad - M), (0, 0))).astype(jnp.bfloat16)

    # Block-diagonal fused weight [[W1^T, 0], [0, W2^T]] -> (K, C_out_p), bf16.
    w_blk = jnp.zeros((K, C_out_p), jnp.float32)
    w_blk = w_blk.at[:C_in, :C_half].set(jnp.transpose(w1))
    w_blk = w_blk.at[C_in:, C_half:C_out].set(jnp.transpose(w2))
    w_blk = w_blk.astype(jnp.bfloat16)

    # Separately sized VMEM limits for the two passes.
    res_bytes = _round_up(K, 16) * C_out_p * 2 + 8 * C_out_p * 4
    p1_bytes = row_p1 * TILE_M + 2 * 8 * C_out_p * 4 + res_bytes
    p2_bytes = row_p2 * TILE_M + res_bytes
    cparams1 = pltpu.CompilerParams(
        dimension_semantics=("parallel",),
        vmem_limit_bytes=int(min(limit_cap, max(16 * 1024 * 1024, 2 * p1_bytes))))
    cparams2 = pltpu.CompilerParams(
        dimension_semantics=("parallel",),
        vmem_limit_bytes=int(min(limit_cap, max(16 * 1024 * 1024, 2 * p2_bytes))))

    # ---- Pass 1: ReLU + fused matmul -> per-tile partial BN stats only. ----
    stats = pl.pallas_call(
        _fr_stats_kernel,
        grid=(num_tiles,),
        in_specs=[
            pl.BlockSpec((TILE_M, K), lambda i: (i, 0)),
            pl.BlockSpec((K, C_out_p), lambda i: (0, 0)),       # resident weight
        ],
        out_specs=pl.BlockSpec((8, C_out_p), lambda i: (i, 0)),
        out_shape=jax.ShapeDtypeStruct((num_tiles * 8, C_out_p), jnp.float32),
        compiler_params=cparams1,
    )(x12, w_blk)

    # ---- Tiny XLA reduction: partials -> per-channel scale / shift (f32). ----
    stats = stats.reshape(num_tiles, 8, C_out_p)
    inv_m = 1.0 / float(M)                # pad rows are zero; divide by real M
    mean = jnp.sum(stats[:, 0, :], axis=0) * inv_m
    # TODO(synk): E[y^2]-mean^2 in f32 can lose bits at very large M / |mean|;
    # switch to per-tile mean-shifted (Welford-merge) partials if needed.
    var = jnp.maximum(jnp.sum(stats[:, 1, :], axis=0) * inv_m - mean * mean, 0.0)
    inv_std = jax.lax.rsqrt(var + BN_EPS)
    gamma_p = jnp.pad(gamma.astype(jnp.float32), (0, C_out_p - C_out))
    beta_p = jnp.pad(beta.astype(jnp.float32), (0, C_out_p - C_out))
    scale = gamma_p * inv_std
    shift = beta_p - mean * scale
    scale_shift = (jnp.zeros((8, C_out_p), jnp.float32)
                   .at[0].set(scale).at[1].set(shift))

    # ---- Pass 2: fused ReLU + matmul + BN scale/shift -> final output. ----
    out_pad = pl.pallas_call(
        _fr_fused_kernel,
        grid=(num_tiles,),
        in_specs=[
            pl.BlockSpec((TILE_M, K), lambda i: (i, 0)),
            pl.BlockSpec((K, C_out_p), lambda i: (0, 0)),       # resident weight
            pl.BlockSpec((8, C_out_p), lambda i: (0, 0)),       # resident scale/shift
        ],
        out_specs=pl.BlockSpec((TILE_M, C_out_p), lambda i: (i, 0)),
        out_shape=jax.ShapeDtypeStruct((M_pad, C_out_p), jnp.float32),
        compiler_params=cparams2,
    )(x12, w_blk, scale_shift)

    # Epilogue: drop row/channel padding, back to NCHW.  The channel concat
    # already happened inside the block-diagonal matmul, so this is a single
    # contiguous slice + transpose.
    # TODO(synk): emit NCHW (or let the consumer accept NHWC) straight from the
    # kernel to remove this XLA transpose copy of the output.
    out = out_pad[:M, :C_out].reshape(N, Ho, Wo, C_out)
    return jnp.transpose(out, (0, 3, 1, 2))


def _reference(x, w1, w2, gamma, beta):
    # Pure-JAX f32 reference with identical forward semantics.
    xr = jnp.maximum(x, 0.0)
    y1 = jnp.einsum('nchw,oc->nohw', xr[:, :, 0::2, 0::2], w1)
    y2 = jnp.einsum('nchw,oc->nohw', xr[:, :, 1::2, 1::2], w2)
    y = jnp.concatenate([y1, y2], axis=1)
    mean = jnp.mean(y, axis=(0, 2, 3), keepdims=True)
    var = jnp.mean((y - mean) ** 2, axis=(0, 2, 3), keepdims=True)
    yhat = (y - mean) * jax.lax.rsqrt(var + BN_EPS)
    return yhat * gamma.reshape(1, -1, 1, 1) + beta.reshape(1, -1, 1, 1)


if __name__ == "__main__":
    # TODO(synk): BatchNorm running_mean/running_var state update is not
    # implemented (forward-output parity only).
    N, C_in, H, W = 2, 4, 16, 16
    C_out = 8  # must be even

    key = jax.random.PRNGKey(0)
    k_x, k_w1, k_w2 = jax.random.split(key, 3)
    x = jax.random.normal(k_x, (N, C_in, H, W), dtype=jnp.float32)
    w1 = 0.1 * jax.random.normal(k_w1, (C_out // 2, C_in), dtype=jnp.float32)
    w2 = 0.1 * jax.random.normal(k_w2, (C_out // 2, C_in), dtype=jnp.float32)
    gamma = jnp.ones((C_out,), dtype=jnp.float32)
    beta = jnp.zeros((C_out,), dtype=jnp.float32)

    ref = _reference(x, w1, w2, gamma, beta)

    # Auto tiling (M = 128 rows -> 2 tiles of 64).
    out = jax.block_until_ready(factorized_reduce(x, w1, w2, gamma, beta))
    assert out.shape == (N, C_out, H // 2, W // 2)
    assert jnp.allclose(out, ref, atol=2e-2, rtol=2e-2)

    # Forced small tile: exercises the uneven-grid + row-padding path
    # (M = 128, TILE_M = 48 -> 3 tiles, 16 zero-padded rows).
    out2 = jax.block_until_ready(
        factorized_reduce(x, w1, w2, gamma, beta, tile_m=48))
    assert jnp.allclose(out2, ref, atol=2e-2, rtol=2e-2)

    print("KERNEL_OK")
</pallas_src>

<mosaic_0001>
module attributes {stable_mosaic.version = 11 : i64} {
  func.func @_fr_stats_kernel(%arg0: i32, %arg1: memref<64x8xbf16, #tpu.memory_space<vmem>>, %arg2: memref<8x128xbf16, #tpu.memory_space<vmem>>, %arg3: memref<8x128xf32, #tpu.memory_space<vmem>>) attributes {dimension_semantics = [#tpu.dimension_semantics<parallel>], iteration_bounds = array<i64: 2>, scalar_prefetch = 0 : i64, scratch_operands = 0 : i64, tpu.core_type = #tpu.core_type<tc>, window_params = [{transform_indices = @transform_0, window_bounds = array<i64: 64, 8>}, {pipeline_mode = #tpu.pipeline_mode<synchronous>, transform_indices = @transform_1, window_bounds = array<i64: 8, 128>}, {transform_indices = @transform_2, window_bounds = array<i64: 8, 128>}]} {
    %c0 = arith.constant 0 : index
    %c0_0 = arith.constant 0 : index
    %0 = vector.load %arg1[%c0, %c0_0] : memref<64x8xbf16, #tpu.memory_space<vmem>>, vector<64x8xbf16>
    %cst = arith.constant 0.000000e+00 : bf16
    %1 = vector.broadcast %cst : bf16 to vector<64x8xbf16>
    %2 = arith.maximumf %0, %1 : vector<64x8xbf16>
    %c0_1 = arith.constant 0 : index
    %c0_2 = arith.constant 0 : index
    %3 = vector.load %arg2[%c0_1, %c0_2] : memref<8x128xbf16, #tpu.memory_space<vmem>>, vector<8x128xbf16>
    %cst_3 = arith.constant dense<0.000000e+00> : vector<64x128xf32>
    %4 = tpu.matmul %2, %3, %cst_3 {dimension_numbers = #tpu.dot_dimension_numbers<[1], [0], [0], [1], [0, 0, 1, 1], [], []>} : vector<64x8xbf16>, vector<8x128xbf16>, vector<64x128xf32> -> vector<64x128xf32>
    %cst_4 = arith.constant dense<0.000000e+00> : vector<128xf32>
    %5 = vector.multi_reduction <add>, %4, %cst_4 [0] : vector<64x128xf32> to vector<128xf32>
    %6 = vector.shape_cast %5 : vector<128xf32> to vector<1x128xf32>
    %c0_5 = arith.constant 0 : index
    %c0_6 = arith.constant 0 : index
    %7 = vector.load %arg3[%c0_5, %c0_6] : memref<8x128xf32, #tpu.memory_space<vmem>>, vector<1x128xf32>
    tpu.vector_store %arg3[%c0_5, %c0_6], %6 {strides = array<i32>} : memref<8x128xf32, #tpu.memory_space<vmem>>, vector<1x128xf32>,
    %8 = arith.mulf %4, %4 : vector<64x128xf32>
    %cst_7 = arith.constant dense<0.000000e+00> : vector<128xf32>
    %9 = vector.multi_reduction <add>, %8, %cst_7 [0] : vector<64x128xf32> to vector<128xf32>
    %10 = vector.shape_cast %9 : vector<128xf32> to vector<1x128xf32>
    %c1 = arith.constant 1 : index
    %c0_8 = arith.constant 0 : index
    %11 = vector.load %arg3[%c1, %c0_8] : memref<8x128xf32, #tpu.memory_space<vmem>>, vector<1x128xf32>
    tpu.vector_store %arg3[%c1, %c0_8], %10 {strides = array<i32>} : memref<8x128xf32, #tpu.memory_space<vmem>>, vector<1x128xf32>,
    return
  }
  func.func @transform_0(%arg0: i32) -> (i32, i32) {
    %c0_i32 = arith.constant 0 : i32
    %c0_i32_0 = arith.constant 0 : i32
    return %arg0, %c0_i32 : i32, i32
  }
  func.func @transform_1(%arg0: i32) -> (i32, i32) {
    %c0_i32 = arith.constant 0 : i32
    %c0_i32_0 = arith.constant 0 : i32
    %c0_i32_1 = arith.constant 0 : i32
    return %c0_i32, %c0_i32_0 : i32, i32
  }
  func.func @transform_2(%arg0: i32) -> (i32, i32) {
    %c0_i32 = arith.constant 0 : i32
    %c0_i32_0 = arith.constant 0 : i32
    return %arg0, %c0_i32 : i32, i32
  }
}

</mosaic_0001>

<llo_original>
// kernel: tpu_custom_call.1
$region0: #{tpu_custom_call.1}
  #allocation0 [shape = 'u32[]', space=smem, size = 0x4, offset = 0x4, fixed_abs, tag = 'smem constant byte address 0x4 - core index']
  #allocation1 [shape = 'u32[72,128]{1,0:T(1,128)}', space=vmem, size = 0x9000, scoped, tag = 'internal scratch']
  %s0 = inlined_call_operand.vmem [shape: bf16[128,8], index: 0, kind: input, shape index: {}]
  %s1 = inlined_call_operand.vmem [shape: bf16[8,128], index: 1, kind: input, shape index: {}]
  %s2 = inlined_call_operand.hbm [shape: f32[16,128], index: 2, kind: output, shape index: {}]
  %s3 = sld [smem:[#allocation0]]
  $region41: #{tpu_custom_call.1} parent=0
    _
  %s5 = ssub.s32 1, %s3
  %s6 = scalar_select 0, %s5, %s3
  $region1: #{tpu_custom_call.1} parent=0
    #allocation2 [shape = 'u8[8192]{0}', space=vmem, size = 0x2000, scoped, tag = 'output window, operand 0']
    #allocation3 [shape = 's32[2]{0}', space=sflag, size = 0x8, scoped, tag = 'scoped memory for tpu_custom_call.1']
    %7 = vsyncpa [#allocation3], 0
    %s8 = scalar_lea.sflag [#allocation3], 1
    %9 = vsyncpa %s8, 0
    loop: start=0, step=1, limit=4
    $region2: #{tpu_custom_call.1} parent=1 // loop_pre_header
      _
    $region3: #{tpu_custom_call.1} parent=1 // loop_header
      %s11 = sphi 0, %s15
      %p12 = scmp.ge.s32.totalorder %s11, 4
      %s21 = sphi 0, %s23
      %s24 = sphi 0, %s21
      %s25 = sphi 0, %s24
      %s41 = sphi 0, %s25
      %s45 = sphi 0, %s45
      %s47 = sphi 0, %s45
      %s48 = sphi 0, %s47
      %s62 = sphi 0, %s48
      %s68 = sphi 0, %s70
      %s71 = sphi 0, %s68
      %s72 = sphi 0, %s71
      %s88 = sphi 0, %s72
    $region4: #{tpu_custom_call.1} parent=1 // loop_header_branch
      %14 = sbr.rel (%p12) target = $region8
    $region5: #{tpu_custom_call.1} parent=1 // loop_body
      %s16 = ssub.s32 %s11, 1
      %s17 = ssub.s32 %s11, 2
      %s18 = sadd.s32 %s11, 1
      %s19 = ssub.s32 %s11, %s18
      %p20 = scmp.eq.s32.totalorder %s19, 0
      %s22 = sadd.s32 %s21, 1
      %s23 = scalar_select %p20, %s21, %s22
      %p26 = pneg %p20
      %p27 = scmp.eq.s32.totalorder %s11, 1
      %p28 = por %p26, %p27
      %p29 = scmp.ne.s32.totalorder %s21, %s24
      %p30 = scmp.eq.s32.totalorder %s11, 0
      %p31 = por %p29, %p30
      %p32 = scmp.ne.s32.totalorder %s21, %s24
      %p33 = scmp.eq.s32.totalorder %s16, 1
      %p34 = por %p32, %p33
      %p35 = scmp.ne.s32.totalorder %s24, %s25
      %p36 = scmp.eq.s32.totalorder %s16, 0
      %p37 = por %p35, %p36
      %p38 = scmp.ne.s32.totalorder %s24, %s25
      %p39 = scmp.eq.s32.totalorder %s17, 1
      %p40 = por %p38, %p39
      %p42 = scmp.ne.s32.totalorder %s25, %s41
      %p43 = scmp.eq.s32.totalorder %s17, 0
      %p44 = por %p42, %p43
      %s46 = sadd.s32 %s45, 1
      %p49 = scmp.eq.s32.totalorder %s11, 1
      %p50 = scmp.ne.s32.totalorder %s45, %s47
      %p51 = scmp.eq.s32.totalorder %s11, 0
      %p52 = por %p50, %p51
      %p53 = scmp.ne.s32.totalorder %s45, %s47
      %p54 = scmp.eq.s32.totalorder %s16, 1
      %p55 = por %p53, %p54
      %p56 = scmp.ne.s32.totalorder %s47, %s48
      %p57 = scmp.eq.s32.totalorder %s16, 0
      %p58 = por %p56, %p57
      %p59 = scmp.ne.s32.totalorder %s47, %s48
      %p60 = scmp.eq.s32.totalorder %s17, 1
      %p61 = por %p59, %p60
      %p63 = scmp.ne.s32.totalorder %s48, %s62
      %p64 = scmp.eq.s32.totalorder %s17, 0
      %p65 = por %p63, %p64
      %s66 = ssub.s32 %s11, %s18
      %p67 = scmp.eq.s32.totalorder %s66, 0
      %s69 = sadd.s32 %s68, 1
      %s70 = scalar_select %p67, %s68, %s69
      %p73 = pneg %p67
      %p74 = scmp.eq.s32.totalorder %s11, 1
      %p75 = por %p73, %p74
      %p76 = scmp.ne.s32.totalorder %s68, %s71
      %p77 = scmp.eq.s32.totalorder %s11, 0
      %p78 = por %p76, %p77
      %p79 = scmp.ne.s32.totalorder %s68, %s71
      %p80 = scmp.eq.s32.totalorder %s16, 1
      %p81 = por %p79, %p80
      %p82 = scmp.ne.s32.totalorder %s71, %s72
      %p83 = scmp.eq.s32.totalorder %s16, 0
      %p84 = por %p82, %p83
      %p85 = scmp.ne.s32.totalorder %s71, %s72
      %p86 = scmp.eq.s32.totalorder %s17, 1
      %p87 = por %p85, %p86
      %p89 = scmp.ne.s32.totalorder %s72, %s88
      %p90 = scmp.eq.s32.totalorder %s17, 0
      %p91 = por %p89, %p90
      %p92 = scmp.le.s32.totalorder 1, %s11
      %p93 = scmp.lt.s32.totalorder %s11, 3
      %p94 = pnand %p92, %p93
      %p95 = pneg %p94
      // Predicated region
      $region9: #{tpu_custom_call.1} parent=5 // pred_check
        _
      $region10: #{tpu_custom_call.1} parent=5 // pred_check_branch
        %97 = sbr.rel (%p94) target = $region12
      $region11: #{tpu_custom_call.1} parent=5 // pred_region
        %s98 = ssub.s32 %s11, 1
        // Predicated region
        $region13: #{tpu_custom_call.1} parent=11 // pred_check
          %p99 = pneg %p58
        $region14: #{tpu_custom_call.1} parent=11 // pred_check_branch
          %101 = sbr.rel (%p99) target = $region16
        $region15: #{tpu_custom_call.1} parent=11 // pred_region
          _
        $region16: #{tpu_custom_call.1} parent=11 // pred_fallthru
          _
      $region12: #{tpu_custom_call.1} parent=5 // pred_fallthru
        _
      %p102 = scmp.lt.s32.totalorder %s11, 2
      // Predicated region
      $region17: #{tpu_custom_call.1} parent=5 // pred_check
        %p103 = pneg %p102
      $region18: #{tpu_custom_call.1} parent=5 // pred_check_branch
        %105 = sbr.rel (%p103) target = $region20
      $region19: #{tpu_custom_call.1} parent=5 // pred_region
        // Predicated region
        $region21: #{tpu_custom_call.1} parent=19 // pred_check
          %p106 = pneg %p31
        $region22: #{tpu_custom_call.1} parent=19 // pred_check_branch
          %108 = sbr.rel (%p106) target = $region24
        $region23: #{tpu_custom_call.1} parent=19 // pred_region
          %s109 = smul.u32 8, %s11
          %p110 = scmp.lt.s32.totalorder %s109, 15
          %s111 = scalar_select %p110, %s109, 15
          %s112 = smul.addr %s111, 4
          %s113 = scalar_lea.vmem %s0, %s112
          %s114 = smul.u32 8, %s11
        $region24: #{tpu_custom_call.1} parent=19 // pred_fallthru
          _
      $region20: #{tpu_custom_call.1} parent=5 // pred_fallthru
        _
      %p115 = scmp.le.s32.totalorder 1, %s11
      %p116 = scmp.lt.s32.totalorder %s11, 3
      %p117 = pnand %p115, %p116
      %p118 = pneg %p117
      // Predicated region
      $region25: #{tpu_custom_call.1} parent=5 // pred_check
        _
      $region26: #{tpu_custom_call.1} parent=5 // pred_check_branch
        %120 = sbr.rel (%p117) target = $region28
      $region27: #{tpu_custom_call.1} parent=5 // pred_region
        %s121 = ssub.s32 %s11, 1
        %s122 = smul.u32 8, %s16
        %p123 = scmp.lt.s32.totalorder %s122, 15
        %s124 = scalar_select %p123, %s122, 15
        %s125 = smul.addr %s124, 4
        %s126 = scalar_lea.vmem %s0, %s125
        %p127 = pneg %p37
        %p128 = pneg %p34
        %p129 = pneg %p58
        %p130 = pneg %p55
        %p131 = pneg %p84
        %p132 = pneg %p81
        %s133 = sand.u32 %s71, 1
        %s134 = scalar_lea.sflag [#allocation3], %s133
        %s135 = sand.u32 %s71, 1
        %s136 = smul.addr %s135, 8
        %s137 = scalar_lea.vmem [#allocation2], %s136
        %s138 = smul.u32 8, %s16
        %p139 = scmp.lt.s32.totalorder %s138, 15
        %s140 = scalar_select %p139, %s138, 15
        %s141 = smul.addr %s140, 4
        %s142 = scalar_lea.vmem %s0, %s141
        %s143 = smul.u32 8, %s16
        %v145 = vld [vmem:[%s142] sm:$0xf]
        %v146 = vld [vmem:[%s142 + $0x4] sm:$0xf]
        %v147 = vld [vmem:[%s142 + $0x8] sm:$0xf]
        %v148 = vld [vmem:[%s142 + $0xc] sm:$0xf]
        %v149 = vld [vmem:[%s142 + $0x10] sm:$0xf]
        %v150 = vld [vmem:[%s142 + $0x14] sm:$0xf]
        %v151 = vld [vmem:[%s142 + $0x18] sm:$0xf]
        %v152 = vld [vmem:[%s142 + $0x1c] sm:$0xf]
        %v153 = vunpack.c.l.bf16 %v145
        %v154 = vunpack.c.l.bf16 %v146
        %v155 = vunpack.c.l.bf16 %v147
        %v156 = vunpack.c.l.bf16 %v148
        %v157 = vunpack.c.l.bf16 %v149
        %v158 = vunpack.c.l.bf16 %v150
        %v159 = vunpack.c.l.bf16 %v151
        %v160 = vunpack.c.l.bf16 %v152
        %v161 = vmax.f32 %v153, 0.0
        %v162 = vmax.f32 %v154, 0.0
        %v163 = vmax.f32 %v155, 0.0
        %v164 = vmax.f32 %v156, 0.0
        %v165 = vmax.f32 %v157, 0.0
        %v166 = vmax.f32 %v158, 0.0
        %v167 = vmax.f32 %v159, 0.0
        %v168 = vmax.f32 %v160, 0.0
        %v169 = vpack.c.bf16 %v162, %v161
        %v170 = vpack.c.bf16 %v164, %v163
        %v171 = vpack.c.bf16 %v166, %v165
        %v172 = vpack.c.bf16 %v168, %v167
        %v173 = vld [vmem:[%s1] sm:$0xf]
        %vm174 = vcmask 64512
        %v176 = vsel %vm174, %v169, 0
        %v179 = vsel %vm174, %v170, 0
        %v182 = vsel %vm174, %v171, 0
        %v185 = vsel %vm174, %v172, 0
        %vm187 = vcmask 1043456
        %v189 = vsel %vm187, %v173, 0
        %191 = vmatpush.bf16.msra.mxu0 0
        %192 = vmatpush.bf16.msra.mxu0 0
        %193 = vmatpush.bf16.msra.mxu0 0
        %194 = vmatpush.bf16.msra.mxu0 0
        %195 = vmatpush.bf16.msra.mxu0 0
        %196 = vmatpush.bf16.msra.mxu0 0
        %197 = vmatpush.bf16.msra.mxu0 0
        %198 = vmatpush.bf16.msra.mxu0 %v189
        %199 = vmatmul.bf16.gmra.mxu0 %v176
        %v200 = vpop.f32.mrf.mxu0
        %v201 = vadd.f32 0.0, %v200
        %v202 = vpop.f32.mrf.mxu0
        %v203 = vadd.f32 0.0, %v202
        %204 = vmatmul.bf16.gmra.mxu0 %v179
        %v205 = vpop.f32.mrf.mxu0
        %v206 = vadd.f32 0.0, %v205
        %v207 = vpop.f32.mrf.mxu0
        %v208 = vadd.f32 0.0, %v207
        %209 = vmatmul.bf16.gmra.mxu0 %v182
        %v210 = vpop.f32.mrf.mxu0
        %v211 = vadd.f32 0.0, %v210
        %v212 = vpop.f32.mrf.mxu0
        %v213 = vadd.f32 0.0, %v212
        %214 = vmatmul.bf16.gmra.mxu0 %v185
        %v215 = vpop.f32.mrf.mxu0
        %v216 = vadd.f32 0.0, %v215
        %v217 = vpop.f32.mrf.mxu0
        %v218 = vadd.f32 0.0, %v217
        %219 = vdwg.mxu0
        %v220 = vadd.f32 %v201, %v203
        %v221 = vadd.f32 %v220, %v206
        %v222 = vadd.f32 %v221, %v208
        %v223 = vadd.f32 %v222, %v211
        %v224 = vadd.f32 %v223, %v213
        %v225 = vadd.f32 %v224, %v216
        %v226 = vadd.f32 %v225, %v218
        %v227 = vrot.slane %v226, 4
        %v228 = vadd.f32 %v226, %v227
        %v229 = vrot.slane %v228, 2
        %v230 = vadd.f32 %v228, %v229
        %v231 = vrot.slane %v230, 1
        %v232 = vadd.f32 %v230, %v231
        %233 = vst [vmem:[%s137] sm:$0x1] %v232
        %v234 = vmul.f32 %v201, %v201
        %v235 = vmul.f32 %v203, %v203
        %v236 = vmul.f32 %v206, %v206
        %v237 = vmul.f32 %v208, %v208
        %v238 = vmul.f32 %v211, %v211
        %v239 = vmul.f32 %v213, %v213
        %v240 = vmul.f32 %v216, %v216
        %v241 = vmul.f32 %v218, %v218
        %v242 = vadd.f32 %v234, %v235
        %v243 = vadd.f32 %v242, %v236
        %v244 = vadd.f32 %v243, %v237
        %v245 = vadd.f32 %v244, %v238
        %v246 = vadd.f32 %v245, %v239
        %v247 = vadd.f32 %v246, %v240
        %v248 = vadd.f32 %v247, %v241
        %v249 = vrot.slane %v248, 4
        %v250 = vadd.f32 %v248, %v249
        %v251 = vrot.slane %v250, 2
        %v252 = vadd.f32 %v250, %v251
        %v253 = vrot.slane %v252, 1
        %v254 = vadd.f32 %v252, %v253
        %255 = vst [vmem:[%s137 + $0x1] sm:$0x1] %v254
        %s256 = sand.u32 %s71, 1
        %s257 = scalar_lea.sflag [#allocation3], %s256
        %s258 = sand.u32 %s71, 1
        %s259 = smul.addr %s258, 8
        %s260 = scalar_lea.vmem [#allocation2], %s259
        // Predicated region
        $region29: #{tpu_custom_call.1} parent=27 // pred_check
          %p261 = pneg %p81
        $region30: #{tpu_custom_call.1} parent=27 // pred_check_branch
          %263 = sbr.rel (%p261) target = $region32
        $region31: #{tpu_custom_call.1} parent=27 // pred_region
          %265 = vsyncadd %s257, 0
          %s266 = smul.addr %s16, 8
          %s267 = scalar_lea.hbm %s2, %s266
          %s269 = sshll.u32 %s260, 4
          %s270 = int_to_ptr.vmem [resolvable:$true] %s269
          %s271 = sshll.u32 %s267, 4
          %s272 = int_to_ptr.hbm [resolvable:$true] %s271
          %274 = dma.vmem_to_hbm [thread:$0]  %s270, 128, %s272, %s257
        $region32: #{tpu_custom_call.1} parent=27 // pred_fallthru
          _
      $region28: #{tpu_custom_call.1} parent=5 // pred_fallthru
        _
      %p275 = scmp.le.s32.totalorder 2, %s11
      // Predicated region
      $region33: #{tpu_custom_call.1} parent=5 // pred_check
        %p276 = pneg %p275
      $region34: #{tpu_custom_call.1} parent=5 // pred_check_branch
        %278 = sbr.rel (%p276) target = $region36
      $region35: #{tpu_custom_call.1} parent=5 // pred_region
        %s279 = ssub.s32 %s11, 2
        // Predicated region
        $region37: #{tpu_custom_call.1} parent=35 // pred_check
          %p280 = pneg %p87
        $region38: #{tpu_custom_call.1} parent=35 // pred_check_branch
          %282 = sbr.rel (%p280) target = $region40
        $region39: #{tpu_custom_call.1} parent=35 // pred_region
          %s283 = sand.u32 %s72, 1
          %s284 = scalar_lea.sflag [#allocation3], %s283
          %s285 = sand.u32 %s72, 1
          %s286 = smul.addr %s285, 8
          %s287 = scalar_lea.vmem [#allocation2], %s286
          %289 = dma.done %s284, 128
        $region40: #{tpu_custom_call.1} parent=35 // pred_fallthru
          _
      $region36: #{tpu_custom_call.1} parent=5 // pred_fallthru
        _
    $region6: #{tpu_custom_call.1} parent=1 // loop_footer
      %s15 = sadd.s32 1, %s11
    $region7: #{tpu_custom_call.1} parent=1 // loop_footer_branch
      %10 = sbr.rel target = $region3
    $region8: #{tpu_custom_call.1} parent=1 // loop_exit
      _
    %290 = vsyncpa [#allocation3], 1
    %s291 = scalar_lea.sflag [#allocation3], 1
    %292 = vsyncpa %s291, 1

</llo_original>
